<compile_context>
chip_gen: v7x
topology: tpu7x:2x2x1
jax: 0.10.0
libtpu: 0.0.40
codegen_flags: <defaults>
</compile_context>

<pallas_src>
import jax
import jax.numpy as jnp
from jax.experimental import pallas as pl
from jax.experimental.pallas import tpu as pltpu


def _round_up(n, m):
    return ((n + m - 1) // m) * m


def _mlp_kernel(x_ref, w1_ref, b1_ref, w2_ref, b2_ref, o_ref):
    # fc1: MXU-natural (TB, F) @ (F, H) -> (TB, H); the streamed x tile is the LHS
    # and is never transposed.
    h = jnp.dot(x_ref[...], w1_ref[...], preferred_element_type=jnp.float32)
    h = jnp.maximum(h + b1_ref[...], 0.0)                      # ReLU, (TB, H)
    # fc2 (out_features=1) + identity mean over the size-1 dim, on the VPU/XLU:
    # y[b] = sum_h relu(...)[b, h] * w2[h] + b2.
    o_ref[...] = jnp.sum(h * w2_ref[...], axis=1, keepdims=True) + b2_ref[...]


def simple_mlp_forward(x, w1, b1, w2, b2, *, tile_rows=None):
    """Forward pass of SimpleMLP.

    x:  (B, F) float32
    w1: (H, F) float32   (PyTorch nn.Linear layout: (out_features, in_features))
    b1: (H,)   float32
    w2: (1, H) float32
    b2: (1,)   float32
    Returns (B,) float32  (== torch.mean(fc2(relu(fc1(x))), dim=1)).
    """
    B, F = x.shape
    H = w1.shape[0]
    itemsize = 4

    # ---- generation-aware VMEM budget & tile size ---------------------------
    try:
        vmem_cap = int(pltpu.get_tpu_info().vmem_capacity_bytes)
    except Exception:
        vmem_cap = 64 * 1024 * 1024                      # conservative (v7x per-TC)
    if vmem_cap >= 100 * 1024 * 1024:                    # v5e / v6e: 128 MiB VMEM
        vmem_budget, default_rows = 96 * 1024 * 1024, 2048
    else:                                                # v7x: 64 MiB per TC
        vmem_budget, default_rows = 52 * 1024 * 1024, 1024

    # Lane-padded VMEM footprint of the resident (F, H) weight block.
    w1_vmem = _round_up(F, 8) * 128 * itemsize
    headroom = 8 * 1024 * 1024
    per_row = 2 * F * itemsize + 4096                    # dbl-buffered x row + out/temp slack
    usable = max(per_row * 128, vmem_budget - 2 * w1_vmem - headroom)
    rows_fit = max(128, (usable // per_row) // 128 * 128)

    auto = tile_rows is None
    if auto:
        tile_rows = min(default_rows, rows_fit)

    if B <= tile_rows:
        tb = _round_up(max(B, 1), 8)
    else:
        tb = max(128, (tile_rows // 128) * 128)
    if auto and pl.cdiv(B, tb) == 1 and B > 128:
        # Keep >= 2 batch tiles so ("parallel",) can feed both v7x TensorCores.
        tb = max(128, _round_up(pl.cdiv(B, 2), 128))

    grid = (pl.cdiv(B, tb),)
    b_rows = grid[0] * tb                                # padded output rows (sliced to B)

    # ---- operand prep (no padding / copying of x) ---------------------------
    x = x.astype(jnp.float32)
    w1_t = jnp.transpose(w1.astype(jnp.float32))         # (F, H): tiny stationary RHS
    b1_row = b1.astype(jnp.float32).reshape(1, H)
    w2_row = w2.astype(jnp.float32).reshape(1, H)
    b2_11 = b2.astype(jnp.float32).reshape(1, 1)

    tile_bytes = tb * F * itemsize
    out_vmem = max(tb // 8, 1) * 4096                    # lane-padded (tb, 1) block
    need = 2 * tile_bytes + 2 * w1_vmem + 2 * out_vmem + headroom
    vmem_limit = int(max(16 * 1024 * 1024, min(vmem_budget, need)))

    cost = pl.CostEstimate(
        flops=2 * B * F * H + 3 * B * H,
        transcendentals=0,
        bytes_accessed=itemsize * (B * F + F * H + 2 * H + 1 + B),
    )

    out = pl.pallas_call(
        _mlp_kernel,
        out_shape=jax.ShapeDtypeStruct((b_rows, 1), jnp.float32),
        grid=grid,
        in_specs=[
            pl.BlockSpec((tb, F), lambda i: (i, 0)),     # x tile: streamed, double-buffered
            pl.BlockSpec((F, H), lambda i: (0, 0)),      # w1^T (resident)
            pl.BlockSpec((1, H), lambda i: (0, 0)),      # b1
            pl.BlockSpec((1, H), lambda i: (0, 0)),      # w2 row
            pl.BlockSpec((1, 1), lambda i: (0, 0)),      # b2
        ],
        out_specs=pl.BlockSpec((tb, 1), lambda i: (i, 0)),
        compiler_params=pltpu.CompilerParams(
            dimension_semantics=("parallel",),
            vmem_limit_bytes=vmem_limit,
        ),
        cost_estimate=cost,
    )(x, w1_t, b1_row, w2_row, b2_11)

    # Rows >= B are computed from garbage partial-block lanes; never use them.
    return out[:B, 0]


if __name__ == "__main__":
    key = jax.random.PRNGKey(0)
    kx, k1, k2, k3, k4 = jax.random.split(key, 5)

    batch = 250          # not a tile multiple -> exercises the partial final block
    input_size = 384     # small stand-in for the default 3072
    hidden = 8

    # Deterministic PyTorch-style uniform(-1/sqrt(fan_in), 1/sqrt(fan_in)) init,
    # stored in nn.Linear's (out_features, in_features) layout.
    bound1 = 1.0 / jnp.sqrt(jnp.float32(input_size))
    bound2 = 1.0 / jnp.sqrt(jnp.float32(hidden))
    x = jax.random.normal(kx, (batch, input_size), jnp.float32)
    w1 = jax.random.uniform(k1, (hidden, input_size), jnp.float32, -bound1, bound1)
    b1 = jax.random.uniform(k2, (hidden,), jnp.float32, -bound1, bound1)
    w2 = jax.random.uniform(k3, (1, hidden), jnp.float32, -bound2, bound2)
    b2 = jax.random.uniform(k4, (1,), jnp.float32, -bound2, bound2)

    # tile_rows=128 -> 2 batch tiles (second one partial), exercising the pipeline.
    out = simple_mlp_forward(x, w1, b1, w2, b2, tile_rows=128)
    out = jax.block_until_ready(out)

    # Also run the auto-tiled (generation-aware) path once.
    out_auto = jax.block_until_ready(simple_mlp_forward(x, w1, b1, w2, b2))

    # Pure-JAX reference matching the PyTorch forward.
    ref = jnp.mean(jnp.maximum(x @ w1.T + b1, 0.0) @ w2.T + b2, axis=1)
    assert out.shape == (batch,)
    assert jnp.allclose(out, ref, atol=1e-5, rtol=1e-5), float(jnp.max(jnp.abs(out - ref)))
    assert jnp.allclose(out_auto, ref, atol=1e-5, rtol=1e-5), float(jnp.max(jnp.abs(out_auto - ref)))

    print("KERNEL_OK")
</pallas_src>

<mosaic_0001>
module attributes {stable_mosaic.version = 11 : i64} {
  func.func @_mlp_kernel(%arg0: i32, %arg1: memref<128x384xf32, #tpu.memory_space<vmem>>, %arg2: memref<384x8xf32, #tpu.memory_space<vmem>>, %arg3: memref<1x8xf32, #tpu.memory_space<vmem>>, %arg4: memref<1x8xf32, #tpu.memory_space<vmem>>, %arg5: memref<1x1xf32, #tpu.memory_space<vmem>>, %arg6: memref<128x1xf32, #tpu.memory_space<vmem>>) attributes {dimension_semantics = [#tpu.dimension_semantics<parallel>], iteration_bounds = array<i64: 2>, scalar_prefetch = 0 : i64, scratch_operands = 0 : i64, tpu.core_type = #tpu.core_type<tc>, window_params = [{transform_indices = @transform_0, window_bounds = array<i64: 128, 384>}, {pipeline_mode = #tpu.pipeline_mode<synchronous>, transform_indices = @transform_1, window_bounds = array<i64: 384, 8>}, {pipeline_mode = #tpu.pipeline_mode<synchronous>, transform_indices = @transform_2, window_bounds = array<i64: 1, 8>}, {pipeline_mode = #tpu.pipeline_mode<synchronous>, transform_indices = @transform_3, window_bounds = array<i64: 1, 8>}, {pipeline_mode = #tpu.pipeline_mode<synchronous>, transform_indices = @transform_4, window_bounds = array<i64: 1, 1>}, {transform_indices = @transform_5, window_bounds = array<i64: 128, 1>}]} {
    %c0 = arith.constant 0 : index
    %c0_0 = arith.constant 0 : index
    %0 = vector.load %arg1[%c0, %c0_0] : memref<128x384xf32, #tpu.memory_space<vmem>>, vector<128x384xf32>
    %c0_1 = arith.constant 0 : index
    %c0_2 = arith.constant 0 : index
    %1 = vector.load %arg2[%c0_1, %c0_2] : memref<384x8xf32, #tpu.memory_space<vmem>>, vector<384x8xf32>
    %cst = arith.constant dense<0.000000e+00> : vector<128x8xf32>
    %2 = tpu.matmul %0, %1, %cst {dimension_numbers = #tpu.dot_dimension_numbers<[1], [0], [0], [1], [0, 0, 1, 1], [], []>} : vector<128x384xf32>, vector<384x8xf32>, vector<128x8xf32> -> vector<128x8xf32>
    %c0_3 = arith.constant 0 : index
    %c0_4 = arith.constant 0 : index
    %3 = vector.load %arg3[%c0_3, %c0_4] : memref<1x8xf32, #tpu.memory_space<vmem>>, vector<1x8xf32>
    %4 = vector.broadcast %3 : vector<1x8xf32> to vector<128x8xf32>
    %5 = arith.addf %2, %4 : vector<128x8xf32>
    %cst_5 = arith.constant 0.000000e+00 : f32
    %6 = vector.broadcast %cst_5 : f32 to vector<128x8xf32>
    %7 = arith.maximumf %5, %6 : vector<128x8xf32>
    %c0_6 = arith.constant 0 : index
    %c0_7 = arith.constant 0 : index
    %8 = vector.load %arg4[%c0_6, %c0_7] : memref<1x8xf32, #tpu.memory_space<vmem>>, vector<1x8xf32>
    %9 = vector.broadcast %8 : vector<1x8xf32> to vector<128x8xf32>
    %10 = arith.mulf %7, %9 : vector<128x8xf32>
    %cst_8 = arith.constant dense<0.000000e+00> : vector<128xf32>
    %11 = vector.multi_reduction <add>, %10, %cst_8 [1] : vector<128x8xf32> to vector<128xf32>
    %12 = vector.shape_cast %11 : vector<128xf32> to vector<128x1xf32>
    %c0_9 = arith.constant 0 : index
    %c0_10 = arith.constant 0 : index
    %13 = vector.load %arg5[%c0_9, %c0_10] : memref<1x1xf32, #tpu.memory_space<vmem>>, vector<1x1xf32>
    %14 = vector.broadcast %13 : vector<1x1xf32> to vector<128x1xf32>
    %15 = arith.addf %12, %14 : vector<128x1xf32>
    %c0_11 = arith.constant 0 : index
    %c0_12 = arith.constant 0 : index
    %16 = vector.load %arg6[%c0_11, %c0_12] : memref<128x1xf32, #tpu.memory_space<vmem>>, vector<128x1xf32>
    tpu.vector_store %arg6[%c0_11, %c0_12], %15 {strides = array<i32>} : memref<128x1xf32, #tpu.memory_space<vmem>>, vector<128x1xf32>,
    return
  }
  func.func @transform_0(%arg0: i32) -> (i32, i32) {
    %c0_i32 = arith.constant 0 : i32
    %c0_i32_0 = arith.constant 0 : i32
    return %arg0, %c0_i32 : i32, i32
  }
  func.func @transform_1(%arg0: i32) -> (i32, i32) {
    %c0_i32 = arith.constant 0 : i32
    %c0_i32_0 = arith.constant 0 : i32
    %c0_i32_1 = arith.constant 0 : i32
    return %c0_i32, %c0_i32_0 : i32, i32
  }
  func.func @transform_2(%arg0: i32) -> (i32, i32) {
    %c0_i32 = arith.constant 0 : i32
    %c0_i32_0 = arith.constant 0 : i32
    %c0_i32_1 = arith.constant 0 : i32
    return %c0_i32, %c0_i32_0 : i32, i32
  }
  func.func @transform_3(%arg0: i32) -> (i32, i32) {
    %c0_i32 = arith.constant 0 : i32
    %c0_i32_0 = arith.constant 0 : i32
    %c0_i32_1 = arith.constant 0 : i32
    return %c0_i32, %c0_i32_0 : i32, i32
  }
  func.func @transform_4(%arg0: i32) -> (i32, i32) {
    %c0_i32 = arith.constant 0 : i32
    %c0_i32_0 = arith.constant 0 : i32
    %c0_i32_1 = arith.constant 0 : i32
    return %c0_i32, %c0_i32_0 : i32, i32
  }
  func.func @transform_5(%arg0: i32) -> (i32, i32) {
    %c0_i32 = arith.constant 0 : i32
    %c0_i32_0 = arith.constant 0 : i32
    return %arg0, %c0_i32 : i32, i32
  }
}

</mosaic_0001>

<llo_original>
// kernel: tpu_custom_call.1
$region0: #{tpu_custom_call.1}
  #allocation0 [shape = 'u32[]', space=smem, size = 0x4, offset = 0x4, fixed_abs, tag = 'smem constant byte address 0x4 - core index']
  #allocation1 [shape = 'u32[144,128]{1,0:T(1,128)}', space=vmem, size = 0x12000, scoped, tag = 'internal scratch']
  #allocation2 [shape = 'f32[1,1]{1,0:T(1,128)S(1)}', space=vmem, size = 0x200, scoped, tag = 'scoped memory for tpu_custom_call.1']
  %s0 = inlined_call_operand.hbm [shape: f32[250,384], index: 0, kind: input, shape index: {}]
  %s1 = inlined_call_operand.vmem [shape: f32[384,8], index: 1, kind: input, shape index: {}]
  %s2 = inlined_call_operand.vmem [shape: f32[1,8], index: 2, kind: input, shape index: {}]
  %s3 = inlined_call_operand.vmem [shape: f32[1,8], index: 3, kind: input, shape index: {}]
  %s4 = inlined_call_operand.<no memory space> [shape: f32[1,1], index: 4, kind: input, shape index: {}]
  %s5 = inlined_call_operand.vmem [shape: f32[256,1], index: 5, kind: output, shape index: {}]
  %s6 = sld [smem:[#allocation0]]
  $region57: #{tpu_custom_call.1} parent=0
    _
  %s8 = ssub.s32 1, %s6
  %s9 = scalar_select 0, %s8, %s6
  %v10 = vstv %s4
  %11 = vst [vmem:[#allocation2] sm:$0x1] %v10
  $region1: #{tpu_custom_call.1} parent=0
    #allocation3 [shape = 'u8[393216]{0}', space=vmem, size = 0x60000, scoped, tag = 'input window, operand 0']
    #allocation4 [shape = 's32[2]{0}', space=sflag, size = 0x8, scoped, tag = 'scoped memory for tpu_custom_call.1']
    %12 = vsyncpa [#allocation4], 0
    %s13 = scalar_lea.sflag [#allocation4], 1
    %14 = vsyncpa %s13, 0
    loop: start=0, step=1, limit=4
    $region2: #{tpu_custom_call.1} parent=1 // loop_pre_header
      _
    $region3: #{tpu_custom_call.1} parent=1 // loop_header
      %s16 = sphi 0, %s20
      %p17 = scmp.ge.s32.totalorder %s16, 4
      %s26 = sphi 0, %s28
      %s29 = sphi 0, %s26
      %s30 = sphi 0, %s29
      %s46 = sphi 0, %s30
      %s50 = sphi 0, %s50
      %s52 = sphi 0, %s50
      %s53 = sphi 0, %s52
      %s67 = sphi 0, %s53
      %s71 = sphi 0, %s71
      %s73 = sphi 0, %s71
      %s74 = sphi 0, %s73
      %s88 = sphi 0, %s74
      %s92 = sphi 0, %s92
      %s94 = sphi 0, %s92
      %s95 = sphi 0, %s94
      %s109 = sphi 0, %s95
      %s113 = sphi 0, %s113
      %s115 = sphi 0, %s113
      %s116 = sphi 0, %s115
      %s130 = sphi 0, %s116
      %s136 = sphi 0, %s138
      %s139 = sphi 0, %s136
      %s140 = sphi 0, %s139
      %s156 = sphi 0, %s140
    $region4: #{tpu_custom_call.1} parent=1 // loop_header_branch
      %19 = sbr.rel (%p17) target = $region8
    $region5: #{tpu_custom_call.1} parent=1 // loop_body
      %s21 = ssub.s32 %s16, 1
      %s22 = ssub.s32 %s16, 2
      %s23 = sadd.s32 %s16, 1
      %s24 = ssub.s32 %s16, %s23
      %p25 = scmp.eq.s32.totalorder %s24, 0
      %s27 = sadd.s32 %s26, 1
      %s28 = scalar_select %p25, %s26, %s27
      %p31 = pneg %p25
      %p32 = scmp.eq.s32.totalorder %s16, 1
      %p33 = por %p31, %p32
      %p34 = scmp.ne.s32.totalorder %s26, %s29
      %p35 = scmp.eq.s32.totalorder %s16, 0
      %p36 = por %p34, %p35
      %p37 = scmp.ne.s32.totalorder %s26, %s29
      %p38 = scmp.eq.s32.totalorder %s21, 1
      %p39 = por %p37, %p38
      %p40 = scmp.ne.s32.totalorder %s29, %s30
      %p41 = scmp.eq.s32.totalorder %s21, 0
      %p42 = por %p40, %p41
      %p43 = scmp.ne.s32.totalorder %s29, %s30
      %p44 = scmp.eq.s32.totalorder %s22, 1
      %p45 = por %p43, %p44
      %p47 = scmp.ne.s32.totalorder %s30, %s46
      %p48 = scmp.eq.s32.totalorder %s22, 0
      %p49 = por %p47, %p48
      %s51 = sadd.s32 %s50, 1
      %p54 = scmp.eq.s32.totalorder %s16, 1
      %p55 = scmp.ne.s32.totalorder %s50, %s52
      %p56 = scmp.eq.s32.totalorder %s16, 0
      %p57 = por %p55, %p56
      %p58 = scmp.ne.s32.totalorder %s50, %s52
      %p59 = scmp.eq.s32.totalorder %s21, 1
      %p60 = por %p58, %p59
      %p61 = scmp.ne.s32.totalorder %s52, %s53
      %p62 = scmp.eq.s32.totalorder %s21, 0
      %p63 = por %p61, %p62
      %p64 = scmp.ne.s32.totalorder %s52, %s53
      %p65 = scmp.eq.s32.totalorder %s22, 1
      %p66 = por %p64, %p65
      %p68 = scmp.ne.s32.totalorder %s53, %s67
      %p69 = scmp.eq.s32.totalorder %s22, 0
      %p70 = por %p68, %p69
      %s72 = sadd.s32 %s71, 1
      %p75 = scmp.eq.s32.totalorder %s16, 1
      %p76 = scmp.ne.s32.totalorder %s71, %s73
      %p77 = scmp.eq.s32.totalorder %s16, 0
      %p78 = por %p76, %p77
      %p79 = scmp.ne.s32.totalorder %s71, %s73
      %p80 = scmp.eq.s32.totalorder %s21, 1
      %p81 = por %p79, %p80
      %p82 = scmp.ne.s32.totalorder %s73, %s74
      %p83 = scmp.eq.s32.totalorder %s21, 0
      %p84 = por %p82, %p83
      %p85 = scmp.ne.s32.totalorder %s73, %s74
      %p86 = scmp.eq.s32.totalorder %s22, 1
      %p87 = por %p85, %p86
      %p89 = scmp.ne.s32.totalorder %s74, %s88
      %p90 = scmp.eq.s32.totalorder %s22, 0
      %p91 = por %p89, %p90
      %s93 = sadd.s32 %s92, 1
      %p96 = scmp.eq.s32.totalorder %s16, 1
      %p97 = scmp.ne.s32.totalorder %s92, %s94
      %p98 = scmp.eq.s32.totalorder %s16, 0
      %p99 = por %p97, %p98
      %p100 = scmp.ne.s32.totalorder %s92, %s94
      %p101 = scmp.eq.s32.totalorder %s21, 1
      %p102 = por %p100, %p101
      %p103 = scmp.ne.s32.totalorder %s94, %s95
      %p104 = scmp.eq.s32.totalorder %s21, 0
      %p105 = por %p103, %p104
      %p106 = scmp.ne.s32.totalorder %s94, %s95
      %p107 = scmp.eq.s32.totalorder %s22, 1
      %p108 = por %p106, %p107
      %p110 = scmp.ne.s32.totalorder %s95, %s109
      %p111 = scmp.eq.s32.totalorder %s22, 0
      %p112 = por %p110, %p111
      %s114 = sadd.s32 %s113, 1
      %p117 = scmp.eq.s32.totalorder %s16, 1
      %p118 = scmp.ne.s32.totalorder %s113, %s115
      %p119 = scmp.eq.s32.totalorder %s16, 0
      %p120 = por %p118, %p119
      %p121 = scmp.ne.s32.totalorder %s113, %s115
      %p122 = scmp.eq.s32.totalorder %s21, 1
      %p123 = por %p121, %p122
      %p124 = scmp.ne.s32.totalorder %s115, %s116
      %p125 = scmp.eq.s32.totalorder %s21, 0
      %p126 = por %p124, %p125
      %p127 = scmp.ne.s32.totalorder %s115, %s116
      %p128 = scmp.eq.s32.totalorder %s22, 1
      %p129 = por %p127, %p128
      %p131 = scmp.ne.s32.totalorder %s116, %s130
      %p132 = scmp.eq.s32.totalorder %s22, 0
      %p133 = por %p131, %p132
      %s134 = ssub.s32 %s16, %s23
      %p135 = scmp.eq.s32.totalorder %s134, 0
      %s137 = sadd.s32 %s136, 1
      %s138 = scalar_select %p135, %s136, %s137
      %p141 = pneg %p135
      %p142 = scmp.eq.s32.totalorder %s16, 1
      %p143 = por %p141, %p142
      %p144 = scmp.ne.s32.totalorder %s136, %s139
      %p145 = scmp.eq.s32.totalorder %s16, 0
      %p146 = por %p144, %p145
      %p147 = scmp.ne.s32.totalorder %s136, %s139
      %p148 = scmp.eq.s32.totalorder %s21, 1
      %p149 = por %p147, %p148
      %p150 = scmp.ne.s32.totalorder %s139, %s140
      %p151 = scmp.eq.s32.totalorder %s21, 0
      %p152 = por %p150, %p151
      %p153 = scmp.ne.s32.totalorder %s139, %s140
      %p154 = scmp.eq.s32.totalorder %s22, 1
      %p155 = por %p153, %p154
      %p157 = scmp.ne.s32.totalorder %s140, %s156
      %p158 = scmp.eq.s32.totalorder %s22, 0
      %p159 = por %p157, %p158
      %p160 = scmp.le.s32.totalorder 1, %s16
      %p161 = scmp.lt.s32.totalorder %s16, 3
      %p162 = pnand %p160, %p161
      %p163 = pneg %p162
      // Predicated region
      $region9: #{tpu_custom_call.1} parent=5 // pred_check
        _
      $region10: #{tpu_custom_call.1} parent=5 // pred_check_branch
        %165 = sbr.rel (%p162) target = $region12
      $region11: #{tpu_custom_call.1} parent=5 // pred_region
        %s166 = ssub.s32 %s16, 1
        // Predicated region
        $region13: #{tpu_custom_call.1} parent=11 // pred_check
          %p167 = pneg %p63
        $region14: #{tpu_custom_call.1} parent=11 // pred_check_branch
          %169 = sbr.rel (%p167) target = $region16
        $region15: #{tpu_custom_call.1} parent=11 // pred_region
          _
        $region16: #{tpu_custom_call.1} parent=11 // pred_fallthru
          _
        // Predicated region
        $region17: #{tpu_custom_call.1} parent=11 // pred_check
          %p170 = pneg %p84
        $region18: #{tpu_custom_call.1} parent=11 // pred_check_branch
          %172 = sbr.rel (%p170) target = $region20
        $region19: #{tpu_custom_call.1} parent=11 // pred_region
          _
        $region20: #{tpu_custom_call.1} parent=11 // pred_fallthru
          _
        // Predicated region
        $region21: #{tpu_custom_call.1} parent=11 // pred_check
          %p173 = pneg %p105
        $region22: #{tpu_custom_call.1} parent=11 // pred_check_branch
          %175 = sbr.rel (%p173) target = $region24
        $region23: #{tpu_custom_call.1} parent=11 // pred_region
          _
        $region24: #{tpu_custom_call.1} parent=11 // pred_fallthru
          _
        // Predicated region
        $region25: #{tpu_custom_call.1} parent=11 // pred_check
          %p176 = pneg %p126
        $region26: #{tpu_custom_call.1} parent=11 // pred_check_branch
          %178 = sbr.rel (%p176) target = $region28
        $region27: #{tpu_custom_call.1} parent=11 // pred_region
          _
        $region28: #{tpu_custom_call.1} parent=11 // pred_fallthru
          _
      $region12: #{tpu_custom_call.1} parent=5 // pred_fallthru
        _
      %p179 = scmp.lt.s32.totalorder %s16, 2
      // Predicated region
      $region29: #{tpu_custom_call.1} parent=5 // pred_check
        %p180 = pneg %p179
      $region30: #{tpu_custom_call.1} parent=5 // pred_check_branch
        %182 = sbr.rel (%p180) target = $region32
      $region31: #{tpu_custom_call.1} parent=5 // pred_region
        // Predicated region
        $region33: #{tpu_custom_call.1} parent=31 // pred_check
          %p183 = pneg %p36
        $region34: #{tpu_custom_call.1} parent=31 // pred_check_branch
          %185 = sbr.rel (%p183) target = $region36
        $region35: #{tpu_custom_call.1} parent=31 // pred_region
          %s186 = sand.u32 %s26, 1
          %s187 = scalar_lea.sflag [#allocation4], %s186
          %s188 = sand.u32 %s26, 1
          %s189 = smul.addr %s188, 384
          %s190 = scalar_lea.vmem [#allocation3], %s189
          %s191 = smul.u32 16, %s16
          %s193 = ssub.s32 6144, 6144
          %194 = vsyncadd %s187, %s193
          %s195 = smul.addr %s191, 3
          %s196 = smul.addr %s195, 128
          %s197 = scalar_lea.hbm %s0, %s196
          %s198 = sshll.u32 %s190, 4
          %s199 = int_to_ptr.vmem [resolvable:$true] %s198
          %204 = dma.hbm_to_vmem [thread:$0]  %s197, 6144, %s199, %s187, 384, 384, 24
        $region36: #{tpu_custom_call.1} parent=31 // pred_fallthru
          _
      $region32: #{tpu_custom_call.1} parent=5 // pred_fallthru
        _
      %p205 = scmp.le.s32.totalorder 1, %s16
      %p206 = scmp.lt.s32.totalorder %s16, 3
      %p207 = pnand %p205, %p206
      %p208 = pneg %p207
      // Predicated region
      $region37: #{tpu_custom_call.1} parent=5 // pred_check
        _
      $region38: #{tpu_custom_call.1} parent=5 // pred_check_branch
        %210 = sbr.rel (%p207) target = $region40
      $region39: #{tpu_custom_call.1} parent=5 // pred_region
        %s211 = ssub.s32 %s16, 1
        %s212 = sand.u32 %s29, 1
        %s213 = scalar_lea.sflag [#allocation4], %s212
        %s214 = sand.u32 %s29, 1
        %s215 = smul.addr %s214, 384
        %s216 = scalar_lea.vmem [#allocation3], %s215
        // Predicated region
        $region41: #{tpu_custom_call.1} parent=39 // pred_check
          %p217 = pneg %p42
        $region42: #{tpu_custom_call.1} parent=39 // pred_check_branch
          %219 = sbr.rel (%p217) target = $region44
        $region43: #{tpu_custom_call.1} parent=39 // pred_region
          %220 = dma.done %s213, 6144
        $region44: #{tpu_custom_call.1} parent=39 // pred_fallthru
          _
        %s221 = sand.u32 %s29, 1
        %s222 = scalar_lea.sflag [#allocation4], %s221
        %s223 = sand.u32 %s29, 1
        %s224 = smul.addr %s223, 384
        %s225 = scalar_lea.vmem [#allocation3], %s224
        %p226 = pneg %p42
        %p227 = pneg %p39
        %p228 = pneg %p63
        %p229 = pneg %p60
        %p230 = pneg %p84
        %p231 = pneg %p81
        %p232 = pneg %p105
        %p233 = pneg %p102
        %p234 = pneg %p126
        %p235 = pneg %p123
        %p236 = pneg %p152
        %p237 = pneg %p149
        %s238 = smul.u32 16, %s21
        %p239 = scmp.lt.s32.totalorder %s238, 31
        %s240 = scalar_select %p239, %s238, 31
        %s241 = smul.addr %s240, 8
        %s242 = scalar_lea.vmem %s5, %s241
        %s243 = smul.u32 16, %s21
        %s244 = smul.u32 16, %s21
        %p245 = scmp.lt.s32.totalorder %s244, 31
        %s246 = scalar_select %p245, %s244, 31
        %s247 = smul.addr %s246, 8
        %s248 = scalar_lea.vmem %s5, %s247
        %s249 = smul.u32 16, %s21
        %v250 = vld [vmem:[%s216] sm:$0xff]
        %v251 = vld [vmem:[%s216 + $0x8] sm:$0xff]
        %v252 = vld [vmem:[%s216 + $0x10] sm:$0xff]
        %v253 = vld [vmem:[%s216 + $0x18] sm:$0xff]
        %v254 = vld [vmem:[%s216 + $0x20] sm:$0xff]
        %v255 = vld [vmem:[%s216 + $0x28] sm:$0xff]
        %v256 = vld [vmem:[%s216 + $0x30] sm:$0xff]
        %v257 = vld [vmem:[%s216 + $0x38] sm:$0xff]
        %v258 = vld [vmem:[%s216 + $0x40] sm:$0xff]
        %v259 = vld [vmem:[%s216 + $0x48] sm:$0xff]
        %v260 = vld [vmem:[%s216 + $0x50] sm:$0xff]
        %v261 = vld [vmem:[%s216 + $0x58] sm:$0xff]
        %v262 = vld [vmem:[%s216 + $0x60] sm:$0xff]
        %v263 = vld [vmem:[%s216 + $0x68] sm:$0xff]
        %v264 = vld [vmem:[%s216 + $0x70] sm:$0xff]
        %v265 = vld [vmem:[%s216 + $0x78] sm:$0xff]
        %v266 = vld [vmem:[%s216 + $0x80] sm:$0xff]
        %v267 = vld [vmem:[%s216 + $0x88] sm:$0xff]
        %v268 = vld [vmem:[%s216 + $0x90] sm:$0xff]
        %v269 = vld [vmem:[%s216 + $0x98] sm:$0xff]
        %v270 = vld [vmem:[%s216 + $0xa0] sm:$0xff]
        %v271 = vld [vmem:[%s216 + $0xa8] sm:$0xff]
        %v272 = vld [vmem:[%s216 + $0xb0] sm:$0xff]
        %v273 = vld [vmem:[%s216 + $0xb8] sm:$0xff]
        %v274 = vld [vmem:[%s216 + $0xc0] sm:$0xff]
        %v275 = vld [vmem:[%s216 + $0xc8] sm:$0xff]
        %v276 = vld [vmem:[%s216 + $0xd0] sm:$0xff]
        %v277 = vld [vmem:[%s216 + $0xd8] sm:$0xff]
        %v278 = vld [vmem:[%s216 + $0xe0] sm:$0xff]
        %v279 = vld [vmem:[%s216 + $0xe8] sm:$0xff]
        %v280 = vld [vmem:[%s216 + $0xf0] sm:$0xff]
        %v281 = vld [vmem:[%s216 + $0xf8] sm:$0xff]
        %v282 = vld [vmem:[%s216 + $0x100] sm:$0xff]
        %v283 = vld [vmem:[%s216 + $0x108] sm:$0xff]
        %v284 = vld [vmem:[%s216 + $0x110] sm:$0xff]
        %v285 = vld [vmem:[%s216 + $0x118] sm:$0xff]
        %v286 = vld [vmem:[%s216 + $0x120] sm:$0xff]
        %v287 = vld [vmem:[%s216 + $0x128] sm:$0xff]
        %v288 = vld [vmem:[%s216 + $0x130] sm:$0xff]
        %v289 = vld [vmem:[%s216 + $0x138] sm:$0xff]
        %v290 = vld [vmem:[%s216 + $0x140] sm:$0xff]
        %v291 = vld [vmem:[%s216 + $0x148] sm:$0xff]
        %v292 = vld [vmem:[%s216 + $0x150] sm:$0xff]
        %v293 = vld [vmem:[%s216 + $0x158] sm:$0xff]
        %v294 = vld [vmem:[%s216 + $0x160] sm:$0xff]
        %v295 = vld [vmem:[%s216 + $0x168] sm:$0xff]
        %v296 = vld [vmem:[%s216 + $0x170] sm:$0xff]
        %v297 = vld [vmem:[%s216 + $0x178] sm:$0xff]
        %v298 = vld [vmem:[%s1] sm:$0xff]
        %v299 = vld [vmem:[%s1 + $0x8] sm:$0xff]
        %v300 = vld [vmem:[%s1 + $0x10] sm:$0xff]
        %v301 = vld [vmem:[%s1 + $0x18] sm:$0xff]
        %v302 = vld [vmem:[%s1 + $0x20] sm:$0xff]
        %v303 = vld [vmem:[%s1 + $0x28] sm:$0xff]
        %v304 = vld [vmem:[%s1 + $0x30] sm:$0xff]
        %v305 = vld [vmem:[%s1 + $0x38] sm:$0xff]
        %v306 = vld [vmem:[%s1 + $0x40] sm:$0xff]
        %v307 = vld [vmem:[%s1 + $0x48] sm:$0xff]
        %v308 = vld [vmem:[%s1 + $0x50] sm:$0xff]
        %v309 = vld [vmem:[%s1 + $0x58] sm:$0xff]
        %v310 = vld [vmem:[%s1 + $0x60] sm:$0xff]
        %v311 = vld [vmem:[%s1 + $0x68] sm:$0xff]
        %v312 = vld [vmem:[%s1 + $0x70] sm:$0xff]
        %v313 = vld [vmem:[%s1 + $0x78] sm:$0xff]
        %v314 = vld [vmem:[%s1 + $0x80] sm:$0xff]
        %v315 = vld [vmem:[%s1 + $0x88] sm:$0xff]
        %v316 = vld [vmem:[%s1 + $0x90] sm:$0xff]
        %v317 = vld [vmem:[%s1 + $0x98] sm:$0xff]
        %v318 = vld [vmem:[%s1 + $0xa0] sm:$0xff]
        %v319 = vld [vmem:[%s1 + $0xa8] sm:$0xff]
        %v320 = vld [vmem:[%s1 + $0xb0] sm:$0xff]
        %v321 = vld [vmem:[%s1 + $0xb8] sm:$0xff]
        %v322 = vld [vmem:[%s1 + $0xc0] sm:$0xff]
        %v323 = vld [vmem:[%s1 + $0xc8] sm:$0xff]
        %v324 = vld [vmem:[%s1 + $0xd0] sm:$0xff]
        %v325 = vld [vmem:[%s1 + $0xd8] sm:$0xff]
        %v326 = vld [vmem:[%s1 + $0xe0] sm:$0xff]
        %v327 = vld [vmem:[%s1 + $0xe8] sm:$0xff]
        %v328 = vld [vmem:[%s1 + $0xf0] sm:$0xff]
        %v329 = vld [vmem:[%s1 + $0xf8] sm:$0xff]
        %v330 = vld [vmem:[%s1 + $0x100] sm:$0xff]
        %v331 = vld [vmem:[%s1 + $0x108] sm:$0xff]
        %v332 = vld [vmem:[%s1 + $0x110] sm:$0xff]
        %v333 = vld [vmem:[%s1 + $0x118] sm:$0xff]
        %v334 = vld [vmem:[%s1 + $0x120] sm:$0xff]
        %v335 = vld [vmem:[%s1 + $0x128] sm:$0xff]
        %v336 = vld [vmem:[%s1 + $0x130] sm:$0xff]
        %v337 = vld [vmem:[%s1 + $0x138] sm:$0xff]
        %v338 = vld [vmem:[%s1 + $0x140] sm:$0xff]
        %v339 = vld [vmem:[%s1 + $0x148] sm:$0xff]
        %v340 = vld [vmem:[%s1 + $0x150] sm:$0xff]
        %v341 = vld [vmem:[%s1 + $0x158] sm:$0xff]
        %v342 = vld [vmem:[%s1 + $0x160] sm:$0xff]
        %v343 = vld [vmem:[%s1 + $0x168] sm:$0xff]
        %v344 = vld [vmem:[%s1 + $0x170] sm:$0xff]
        %v345 = vld [vmem:[%s1 + $0x178] sm:$0xff]
        %v346 = vld [vmem:[%s2] sm:$0x1]
        %v348 = vlaneseq
        %v349 = vshrl.u32 %v348, 7
        %v350 = vsub.s32 0, %v349
        %v351 = vrot.slane %v346, %v350
        %353 = vmatprep.subr.mxu0 0.0
        %354 = vmatpush1.msra.mxu0 %v298
        %355 = vmatprep.subr.mxu0 0.0
        %356 = vmatpush1.msra.mxu0 %v299
        %357 = vmatprep.subr.mxu0 0.0
        %358 = vmatpush1.msra.mxu0 %v300
        %359 = vmatprep.subr.mxu0 0.0
        %360 = vmatpush1.msra.mxu0 %v301
        %361 = vmatprep.subr.mxu0 0.0
        %362 = vmatpush1.msra.mxu0 %v302
        %363 = vmatprep.subr.mxu0 0.0
        %364 = vmatpush1.msra.mxu0 %v303
        %365 = vmatprep.subr.mxu0 0.0
        %366 = vmatpush1.msra.mxu0 %v304
        %367 = vmatprep.subr.mxu0 0.0
        %368 = vmatpush1.msra.mxu0 %v305
        %369 = vmatprep.subr.mxu0 0.0
        %370 = vmatpush1.msra.mxu0 %v306
        %371 = vmatprep.subr.mxu0 0.0
        %372 = vmatpush1.msra.mxu0 %v307
        %373 = vmatprep.subr.mxu0 0.0
        %374 = vmatpush1.msra.mxu0 %v308
        %375 = vmatprep.subr.mxu0 0.0
        %376 = vmatpush1.msra.mxu0 %v309
        %377 = vmatprep.subr.mxu0 0.0
        %378 = vmatpush1.msra.mxu0 %v310
        %379 = vmatprep.subr.mxu0 0.0
        %380 = vmatpush1.msra.mxu0 %v311
        %381 = vmatprep.subr.mxu0 0.0
        %382 = vmatpush1.msra.mxu0 %v312
        %383 = vmatprep.subr.mxu0 0.0
        %384 = vmatpush1.msra.mxu0 %v313
        %385 = vmatprep.subr.mxu0 0.0
        %386 = vmatpush1.msra.mxu0 %v314
        %387 = vmatprep.subr.mxu0 0.0
        %388 = vmatpush1.msra.mxu0 %v315
        %389 = vmatprep.subr.mxu0 0.0
        %390 = vmatpush1.msra.mxu0 %v316
        %391 = vmatprep.subr.mxu0 0.0
        %392 = vmatpush1.msra.mxu0 %v317
        %393 = vmatprep.subr.mxu0 0.0
        %394 = vmatpush1.msra.mxu0 %v318
        %395 = vmatprep.subr.mxu0 0.0
        %396 = vmatpush1.msra.mxu0 %v319
        %397 = vmatprep.subr.mxu0 0.0
        %398 = vmatpush1.msra.mxu0 %v320
        %399 = vmatprep.subr.mxu0 0.0
        %400 = vmatpush1.msra.mxu0 %v321
        %401 = vmatprep.subr.mxu0 0.0
        %402 = vmatpush1.msra.mxu0 %v322
        %403 = vmatprep.subr.mxu0 0.0
        %404 = vmatpush1.msra.mxu0 %v323
        %405 = vmatprep.subr.mxu0 0.0
        %406 = vmatpush1.msra.mxu0 %v324
        %407 = vmatprep.subr.mxu0 0.0
        %408 = vmatpush1.msra.mxu0 %v325
        %409 = vmatprep.subr.mxu0 0.0
        %410 = vmatpush1.msra.mxu0 %v326
        %411 = vmatprep.subr.mxu0 0.0
        %412 = vmatpush1.msra.mxu0 %v327
        %413 = vmatprep.subr.mxu0 0.0
        %414 = vmatpush1.msra.mxu0 %v328
        %415 = vmatprep.subr.mxu0 0.0
        %416 = vmatpush1.msra.mxu0 %v329
        %417 = vmatprep.mubr.f32.mxu0 %v251
        %418 = vmatmul.mubr.f32.gmra.mrb[0].mxu0 %v250
        %v419 = vpop.f32.mrb[0].mxu0
        %v420 = vadd.f32 %v351, %v419
        %v421 = vpop.f32.mrb[0].mxu0
        %422 = vmatprep.mubr.f32.mxu0 %v254
        %423 = vmatmul.mubr.f32.gmra.mrb[0].mxu0 %v253
        %v424 = vpop.f32.mrb[0].mxu0
        %v425 = vadd.f32 %v351, %v424
        %v426 = vpop.f32.mrb[0].mxu0
        %427 = vmatprep.mubr.f32.mxu0 %v257
        %428 = vmatmul.mubr.f32.gmra.mrb[0].mxu0 %v256
        %v429 = vpop.f32.mrb[0].mxu0
        %v430 = vadd.f32 %v351, %v429
        %v431 = vpop.f32.mrb[0].mxu0
        %432 = vmatprep.mubr.f32.mxu0 %v260
        %433 = vmatmul.mubr.f32.gmra.mrb[0].mxu0 %v259
        %v434 = vpop.f32.mrb[0].mxu0
        %v435 = vadd.f32 %v351, %v434
        %v436 = vpop.f32.mrb[0].mxu0
        %437 = vmatprep.mubr.f32.mxu0 %v263
        %438 = vmatmul.mubr.f32.gmra.mrb[0].mxu0 %v262
        %v439 = vpop.f32.mrb[0].mxu0
        %v440 = vadd.f32 %v351, %v439
        %v441 = vpop.f32.mrb[0].mxu0
        %442 = vmatprep.mubr.f32.mxu0 %v266
        %443 = vmatmul.mubr.f32.gmra.mrb[0].mxu0 %v265
        %v444 = vpop.f32.mrb[0].mxu0
        %v445 = vadd.f32 %v351, %v444
        %v446 = vpop.f32.mrb[0].mxu0
        %447 = vmatprep.mubr.f32.mxu0 %v269
        %448 = vmatmul.mubr.f32.gmra.mrb[0].mxu0 %v268
        %v449 = vpop.f32.mrb[0].mxu0
        %v450 = vadd.f32 %v351, %v449
        %v451 = vpop.f32.mrb[0].mxu0
        %452 = vmatprep.mubr.f32.mxu0 %v272
        %453 = vmatmul.mubr.f32.gmra.mrb[0].mxu0 %v271
        %v454 = vpop.f32.mrb[0].mxu0
        %v455 = vadd.f32 %v351, %v454
        %v456 = vpop.f32.mrb[0].mxu0
        %457 = vmatprep.mubr.f32.mxu0 %v275
        %458 = vmatmul.mubr.f32.gmra.mrb[0].mxu0 %v274
        %v459 = vpop.f32.mrb[0].mxu0
        %v460 = vadd.f32 %v351, %v459
        %v461 = vpop.f32.mrb[0].mxu0
        %462 = vmatprep.mubr.f32.mxu0 %v278
        %463 = vmatmul.mubr.f32.gmra.mrb[0].mxu0 %v277
        %v464 = vpop.f32.mrb[0].mxu0
        %v465 = vadd.f32 %v351, %v464
        %v466 = vpop.f32.mrb[0].mxu0
        %467 = vmatprep.mubr.f32.mxu0 %v281
        %468 = vmatmul.mubr.f32.gmra.mrb[0].mxu0 %v280
        %v469 = vpop.f32.mrb[0].mxu0
        %v470 = vadd.f32 %v351, %v469
        %v471 = vpop.f32.mrb[0].mxu0
        %472 = vmatprep.mubr.f32.mxu0 %v284
        %473 = vmatmul.mubr.f32.gmra.mrb[0].mxu0 %v283
        %v474 = vpop.f32.mrb[0].mxu0
        %v475 = vadd.f32 %v351, %v474
        %v476 = vpop.f32.mrb[0].mxu0
        %477 = vmatprep.mubr.f32.mxu0 %v287
        %478 = vmatmul.mubr.f32.gmra.mrb[0].mxu0 %v286
        %v479 = vpop.f32.mrb[0].mxu0
        %v480 = vadd.f32 %v351, %v479
        %v481 = vpop.f32.mrb[0].mxu0
        %482 = vmatprep.mubr.f32.mxu0 %v290
        %483 = vmatmul.mubr.f32.gmra.mrb[0].mxu0 %v289
        %v484 = vpop.f32.mrb[0].mxu0
        %v485 = vadd.f32 %v351, %v484
        %v486 = vpop.f32.mrb[0].mxu0
        %487 = vmatprep.mubr.f32.mxu0 %v293
        %488 = vmatmul.mubr.f32.gmra.mrb[0].mxu0 %v292
        %v489 = vpop.f32.mrb[0].mxu0
        %v490 = vadd.f32 %v351, %v489
        %v491 = vpop.f32.mrb[0].mxu0
        %492 = vmatprep.mubr.f32.mxu0 %v296
        %493 = vmatmul.mubr.f32.gmra.mrb[0].mxu0 %v295
        %v494 = vpop.f32.mrb[0].mxu0
        %v495 = vadd.f32 %v351, %v494
        %v496 = vpop.f32.mrb[0].mxu0
        %497 = vdwg.mxu0
        %498 = vmatprep.subr.mxu0 0.0
        %499 = vmatpush1.msra.mxu0 %v330
        %500 = vmatprep.subr.mxu0 0.0
        %501 = vmatpush1.msra.mxu0 %v331
        %502 = vmatprep.subr.mxu0 0.0
        %503 = vmatpush1.msra.mxu0 %v332
        %504 = vmatprep.subr.mxu0 0.0
        %505 = vmatpush1.msra.mxu0 %v333
        %506 = vmatprep.subr.mxu0 0.0
        %507 = vmatpush1.msra.mxu0 %v334
        %508 = vmatprep.subr.mxu0 0.0
        %509 = vmatpush1.msra.mxu0 %v335
        %510 = vmatprep.subr.mxu0 0.0
        %511 = vmatpush1.msra.mxu0 %v336
        %512 = vmatprep.subr.mxu0 0.0
        %513 = vmatpush1.msra.mxu0 %v337
        %514 = vmatprep.subr.mxu0 0.0
        %515 = vmatpush1.msra.mxu0 %v338
        %516 = vmatprep.subr.mxu0 0.0
        %517 = vmatpush1.msra.mxu0 %v339
        %518 = vmatprep.subr.mxu0 0.0
        %519 = vmatpush1.msra.mxu0 %v340
        %520 = vmatprep.subr.mxu0 0.0
        %521 = vmatpush1.msra.mxu0 %v341
        %522 = vmatprep.subr.mxu0 0.0
        %523 = vmatpush1.msra.mxu0 %v342
        %524 = vmatprep.subr.mxu0 0.0
        %525 = vmatpush1.msra.mxu0 %v343
        %526 = vmatprep.subr.mxu0 0.0
        %527 = vmatpush1.msra.mxu0 %v344
        %528 = vmatprep.subr.mxu0 0.0
        %529 = vmatpush1.msra.mxu0 %v345
        %530 = vmatprep.subr.mxu0 0.0
        %531 = vmatpush1.msra.mxu0 0.0
        %532 = vmatprep.subr.mxu0 0.0
        %533 = vmatpush1.msra.mxu0 0.0
        %534 = vmatprep.subr.mxu0 0.0
        %535 = vmatpush1.msra.mxu0 0.0
        %536 = vmatprep.subr.mxu0 0.0
        %537 = vmatpush1.msra.mxu0 0.0
        %538 = vmatprep.subr.mxu0 0.0
        %539 = vmatpush1.msra.mxu0 0.0
        %540 = vmatprep.subr.mxu0 0.0
        %541 = vmatpush1.msra.mxu0 0.0
        %542 = vmatprep.subr.mxu0 0.0
        %543 = vmatpush1.msra.mxu0 0.0
        %544 = vmatprep.subr.mxu0 0.0
        %545 = vmatpush1.msra.mxu0 0.0
        %546 = vmatprep.subr.mxu0 0.0
        %547 = vmatpush1.msra.mxu0 0.0
        %548 = vmatprep.subr.mxu0 0.0
        %549 = vmatpush1.msra.mxu0 0.0
        %550 = vmatprep.subr.mxu0 0.0
        %551 = vmatpush1.msra.mxu0 0.0
        %552 = vmatprep.subr.mxu0 0.0
        %553 = vmatpush1.msra.mxu0 0.0
        %554 = vmatprep.subr.mxu0 0.0
        %555 = vmatpush1.msra.mxu0 0.0
        %556 = vmatprep.subr.mxu0 0.0
        %557 = vmatpush1.msra.mxu0 0.0
        %558 = vmatprep.subr.mxu0 0.0
        %559 = vmatpush1.msra.mxu0 0.0
        %560 = vmatprep.subr.mxu0 0.0
        %561 = vmatpush1.msra.mxu0 0.0
        %562 = vmatprep.mubr.f32.mxu0 0.0
        %563 = vmatmul.mubr.f32.gmra.mrb[0].mxu0 %v252
        %v564 = vpop.f32.mrb[0].mxu0
        %v565 = vadd.f32 %v420, %v564
        %v566 = vpop.f32.mrb[0].mxu0
        %567 = vmatprep.mubr.f32.mxu0 0.0
        %568 = vmatmul.mubr.f32.gmra.mrb[0].mxu0 %v255
        %v569 = vpop.f32.mrb[0].mxu0
        %v570 = vadd.f32 %v425, %v569
        %v571 = vpop.f32.mrb[0].mxu0
        %572 = vmatprep.mubr.f32.mxu0 0.0
        %573 = vmatmul.mubr.f32.gmra.mrb[0].mxu0 %v258
        %v574 = vpop.f32.mrb[0].mxu0
        %v575 = vadd.f32 %v430, %v574
        %v576 = vpop.f32.mrb[0].mxu0
        %577 = vmatprep.mubr.f32.mxu0 0.0
        %578 = vmatmul.mubr.f32.gmra.mrb[0].mxu0 %v261
        %v579 = vpop.f32.mrb[0].mxu0
        %v580 = vadd.f32 %v435, %v579
        %v581 = vpop.f32.mrb[0].mxu0
        %582 = vmatprep.mubr.f32.mxu0 0.0
        %583 = vmatmul.mubr.f32.gmra.mrb[0].mxu0 %v264
        %v584 = vpop.f32.mrb[0].mxu0
        %v585 = vadd.f32 %v440, %v584
        %v586 = vpop.f32.mrb[0].mxu0
        %587 = vmatprep.mubr.f32.mxu0 0.0
        %588 = vmatmul.mubr.f32.gmra.mrb[0].mxu0 %v267
        %v589 = vpop.f32.mrb[0].mxu0
        %v590 = vadd.f32 %v445, %v589
        %v591 = vpop.f32.mrb[0].mxu0
        %592 = vmatprep.mubr.f32.mxu0 0.0
        %593 = vmatmul.mubr.f32.gmra.mrb[0].mxu0 %v270
        %v594 = vpop.f32.mrb[0].mxu0
        %v595 = vadd.f32 %v450, %v594
        %v596 = vpop.f32.mrb[0].mxu0
        %597 = vmatprep.mubr.f32.mxu0 0.0
        %598 = vmatmul.mubr.f32.gmra.mrb[0].mxu0 %v273
        %v599 = vpop.f32.mrb[0].mxu0
        %v600 = vadd.f32 %v455, %v599
        %v601 = vpop.f32.mrb[0].mxu0
        %602 = vmatprep.mubr.f32.mxu0 0.0
        %603 = vmatmul.mubr.f32.gmra.mrb[0].mxu0 %v276
        %v604 = vpop.f32.mrb[0].mxu0
        %v605 = vadd.f32 %v460, %v604
        %v606 = vpop.f32.mrb[0].mxu0
        %607 = vmatprep.mubr.f32.mxu0 0.0
        %608 = vmatmul.mubr.f32.gmra.mrb[0].mxu0 %v279
        %v609 = vpop.f32.mrb[0].mxu0
        %v610 = vadd.f32 %v465, %v609
        %v611 = vpop.f32.mrb[0].mxu0
        %612 = vmatprep.mubr.f32.mxu0 0.0
        %613 = vmatmul.mubr.f32.gmra.mrb[0].mxu0 %v282
        %v614 = vpop.f32.mrb[0].mxu0
        %v615 = vadd.f32 %v470, %v614
        %v616 = vpop.f32.mrb[0].mxu0
        %617 = vmatprep.mubr.f32.mxu0 0.0
        %618 = vmatmul.mubr.f32.gmra.mrb[0].mxu0 %v285
        %v619 = vpop.f32.mrb[0].mxu0
        %v620 = vadd.f32 %v475, %v619
        %v621 = vpop.f32.mrb[0].mxu0
        %622 = vmatprep.mubr.f32.mxu0 0.0
        %623 = vmatmul.mubr.f32.gmra.mrb[0].mxu0 %v288
        %v624 = vpop.f32.mrb[0].mxu0
        %v625 = vadd.f32 %v480, %v624
        %v626 = vpop.f32.mrb[0].mxu0
        %627 = vmatprep.mubr.f32.mxu0 0.0
        %628 = vmatmul.mubr.f32.gmra.mrb[0].mxu0 %v291
        %v629 = vpop.f32.mrb[0].mxu0
        %v630 = vadd.f32 %v485, %v629
        %v631 = vpop.f32.mrb[0].mxu0
        %632 = vmatprep.mubr.f32.mxu0 0.0
        %633 = vmatmul.mubr.f32.gmra.mrb[0].mxu0 %v294
        %v634 = vpop.f32.mrb[0].mxu0
        %v635 = vadd.f32 %v490, %v634
        %v636 = vpop.f32.mrb[0].mxu0
        %637 = vmatprep.mubr.f32.mxu0 0.0
        %638 = vmatmul.mubr.f32.gmra.mrb[0].mxu0 %v297
        %v639 = vpop.f32.mrb[0].mxu0
        %v640 = vadd.f32 %v495, %v639
        %v641 = vpop.f32.mrb[0].mxu0
        %642 = vdwg.mxu0
        %v643 = vmax.f32 %v565, 0.0
        %v644 = vmax.f32 %v570, 0.0
        %v645 = vmax.f32 %v575, 0.0
        %v646 = vmax.f32 %v580, 0.0
        %v647 = vmax.f32 %v585, 0.0
        %v648 = vmax.f32 %v590, 0.0
        %v649 = vmax.f32 %v595, 0.0
        %v650 = vmax.f32 %v600, 0.0
        %v651 = vmax.f32 %v605, 0.0
        %v652 = vmax.f32 %v610, 0.0
        %v653 = vmax.f32 %v615, 0.0
        %v654 = vmax.f32 %v620, 0.0
        %v655 = vmax.f32 %v625, 0.0
        %v656 = vmax.f32 %v630, 0.0
        %v657 = vmax.f32 %v635, 0.0
        %v658 = vmax.f32 %v640, 0.0
        %v659 = vld [vmem:[%s3] sm:$0x1]
        %v661 = vlaneseq
        %v662 = vshrl.u32 %v661, 7
        %v663 = vsub.s32 0, %v662
        %v664 = vrot.slane %v659, %v663
        %v666 = vmul.f32 %v643, %v664
        %v667 = vmul.f32 %v644, %v664
        %v668 = vmul.f32 %v645, %v664
        %v669 = vmul.f32 %v646, %v664
        %v670 = vmul.f32 %v647, %v664
        %v671 = vmul.f32 %v648, %v664
        %v672 = vmul.f32 %v649, %v664
        %v673 = vmul.f32 %v650, %v664
        %v674 = vmul.f32 %v651, %v664
        %v675 = vmul.f32 %v652, %v664
        %v676 = vmul.f32 %v653, %v664
        %v677 = vmul.f32 %v654, %v664
        %v678 = vmul.f32 %v655, %v664
        %v679 = vmul.f32 %v656, %v664
        %v680 = vmul.f32 %v657, %v664
        %v681 = vmul.f32 %v658, %v664
        %vm682 = vcmask 64512
        %v683 = vsel %vm682, %v666, 0.0
        %684 = vadd.xlane.f32.xlu0 %v683
        %v685 = vpop.xlane.xlu0 %684
        %v686 = vsel %vm682, %v667, 0.0
        %687 = vadd.xlane.f32.xlu0 %v686
        %v688 = vpop.xlane.xlu0 %687
        %v689 = vsel %vm682, %v668, 0.0
        %690 = vadd.xlane.f32.xlu0 %v689
        %v691 = vpop.xlane.xlu0 %690
        %v692 = vsel %vm682, %v669, 0.0
        %693 = vadd.xlane.f32.xlu0 %v692
        %v694 = vpop.xlane.xlu0 %693
        %v695 = vsel %vm682, %v670, 0.0
        %696 = vadd.xlane.f32.xlu0 %v695
        %v697 = vpop.xlane.xlu0 %696
        %v698 = vsel %vm682, %v671, 0.0
        %699 = vadd.xlane.f32.xlu0 %v698
        %v700 = vpop.xlane.xlu0 %699
        %v701 = vsel %vm682, %v672, 0.0
        %702 = vadd.xlane.f32.xlu0 %v701
        %v703 = vpop.xlane.xlu0 %702
        %v704 = vsel %vm682, %v673, 0.0
        %705 = vadd.xlane.f32.xlu0 %v704
        %v706 = vpop.xlane.xlu0 %705
        %v707 = vsel %vm682, %v674, 0.0
        %708 = vadd.xlane.f32.xlu0 %v707
        %v709 = vpop.xlane.xlu0 %708
        %v710 = vsel %vm682, %v675, 0.0
        %711 = vadd.xlane.f32.xlu0 %v710
        %v712 = vpop.xlane.xlu0 %711
        %v713 = vsel %vm682, %v676, 0.0
        %714 = vadd.xlane.f32.xlu0 %v713
        %v715 = vpop.xlane.xlu0 %714
        %v716 = vsel %vm682, %v677, 0.0
        %717 = vadd.xlane.f32.xlu0 %v716
        %v718 = vpop.xlane.xlu0 %717
        %v719 = vsel %vm682, %v678, 0.0
        %720 = vadd.xlane.f32.xlu0 %v719
        %v721 = vpop.xlane.xlu0 %720
        %v722 = vsel %vm682, %v679, 0.0
        %723 = vadd.xlane.f32.xlu0 %v722
        %v724 = vpop.xlane.xlu0 %723
        %v725 = vsel %vm682, %v680, 0.0
        %726 = vadd.xlane.f32.xlu0 %v725
        %v727 = vpop.xlane.xlu0 %726
        %v728 = vsel %vm682, %v681, 0.0
        %729 = vadd.xlane.f32.xlu0 %v728
        %v730 = vpop.xlane.xlu0 %729
        %v731 = vld [vmem:[#allocation2] sm:$0x1]
        %v733 = vlaneseq
        %v734 = vshrl.u32 %v733, 7
        %v735 = vsub.s32 0, %v734
        %v736 = vrot.slane %v731, %v735
        %v738 = vadd.f32 %v685, %v736
        %v739 = vadd.f32 %v688, %v736
        %v740 = vadd.f32 %v691, %v736
        %v741 = vadd.f32 %v694, %v736
        %v742 = vadd.f32 %v697, %v736
        %v743 = vadd.f32 %v700, %v736
        %v744 = vadd.f32 %v703, %v736
        %v745 = vadd.f32 %v706, %v736
        %v746 = vadd.f32 %v709, %v736
        %v747 = vadd.f32 %v712, %v736
        %v748 = vadd.f32 %v715, %v736
        %v749 = vadd.f32 %v718, %v736
        %v750 = vadd.f32 %v721, %v736
        %v751 = vadd.f32 %v724, %v736
        %v752 = vadd.f32 %v727, %v736
        %v753 = vadd.f32 %v730, %v736
        %vm754 = vcmask 7168
        %755 = vst.msk [vmem:[%s248] sm:$0xff] %vm754, %v738
        %756 = vst.msk [vmem:[%s248 + $0x8] sm:$0xff] %vm754, %v739
        %757 = vst.msk [vmem:[%s248 + $0x10] sm:$0xff] %vm754, %v740
        %758 = vst.msk [vmem:[%s248 + $0x18] sm:$0xff] %vm754, %v741
        %759 = vst.msk [vmem:[%s248 + $0x20] sm:$0xff] %vm754, %v742
        %760 = vst.msk [vmem:[%s248 + $0x28] sm:$0xff] %vm754, %v743
        %761 = vst.msk [vmem:[%s248 + $0x30] sm:$0xff] %vm754, %v744
        %762 = vst.msk [vmem:[%s248 + $0x38] sm:$0xff] %vm754, %v745
        %763 = vst.msk [vmem:[%s248 + $0x40] sm:$0xff] %vm754, %v746
        %764 = vst.msk [vmem:[%s248 + $0x48] sm:$0xff] %vm754, %v747
        %765 = vst.msk [vmem:[%s248 + $0x50] sm:$0xff] %vm754, %v748
        %766 = vst.msk [vmem:[%s248 + $0x58] sm:$0xff] %vm754, %v749
        %767 = vst.msk [vmem:[%s248 + $0x60] sm:$0xff] %vm754, %v750
        %768 = vst.msk [vmem:[%s248 + $0x68] sm:$0xff] %vm754, %v751
        %769 = vst.msk [vmem:[%s248 + $0x70] sm:$0xff] %vm754, %v752
        %770 = vst.msk [vmem:[%s248 + $0x78] sm:$0xff] %vm754, %v753
        %s771 = smul.u32 16, %s21
        %p772 = scmp.lt.s32.totalorder %s771, 31
        %s773 = scalar_select %p772, %s771, 31
        %s774 = smul.addr %s773, 8
        %s775 = scalar_lea.vmem %s5, %s774
        // Predicated region
        $region45: #{tpu_custom_call.1} parent=39 // pred_check
          %p776 = pneg %p149
        $region46: #{tpu_custom_call.1} parent=39 // pred_check_branch
          %778 = sbr.rel (%p776) target = $region48
        $region47: #{tpu_custom_call.1} parent=39 // pred_region
          %s779 = smul.u32 16, %s21
        $region48: #{tpu_custom_call.1} parent=39 // pred_fallthru
          _
      $region40: #{tpu_custom_call.1} parent=5 // pred_fallthru
        _
      %p780 = scmp.le.s32.totalorder 2, %s16
      // Predicated region
      $region49: #{tpu_custom_call.1} parent=5 // pred_check
        %p781 = pneg %p780
      $region50: #{tpu_custom_call.1} parent=5 // pred_check_branch
        %783 = sbr.rel (%p781) target = $region52
      $region51: #{tpu_custom_call.1} parent=5 // pred_region
        %s784 = ssub.s32 %s16, 2
        // Predicated region
        $region53: #{tpu_custom_call.1} parent=51 // pred_check
          %p785 = pneg %p155
        $region54: #{tpu_custom_call.1} parent=51 // pred_check_branch
          %787 = sbr.rel (%p785) target = $region56
        $region55: #{tpu_custom_call.1} parent=51 // pred_region
          %s788 = smul.u32 16, %s22
          %p789 = scmp.lt.s32.totalorder %s788, 31
          %s790 = scalar_select %p789, %s788, 31
          %s791 = smul.addr %s790, 8
          %s792 = scalar_lea.vmem %s5, %s791
        $region56: #{tpu_custom_call.1} parent=51 // pred_fallthru
          _
      $region52: #{tpu_custom_call.1} parent=5 // pred_fallthru
        _
    $region6: #{tpu_custom_call.1} parent=1 // loop_footer
      %s20 = sadd.s32 1, %s16
    $region7: #{tpu_custom_call.1} parent=1 // loop_footer_branch
      %15 = sbr.rel target = $region3
    $region8: #{tpu_custom_call.1} parent=1 // loop_exit
      _
    %793 = vsyncpa [#allocation4], 1
    %s794 = scalar_lea.sflag [#allocation4], 1
    %795 = vsyncpa %s794, 1

</llo_original>
